<compile_context>
chip_gen: v7x
topology: tpu7x:2x2x1
jax: 0.10.0
libtpu: 0.0.40
codegen_flags: <defaults>
</compile_context>

<pallas_src>
import functools

import jax
import jax.numpy as jnp
from jax import lax
from jax.experimental import pallas as pl
from jax.experimental.pallas import tpu as pltpu


def _round_up(x, m):
    return (x + m - 1) // m * m


def _fused_kernel(phi_ref, w_ref, b_ref, out_ref, *, action_dim):
    """Fused merged-branch MLP.

    phi_ref : (TB, K)   zero-padded input features
    w_ref   : (3, K, K) padded weights: layer1 = [pi_w1 | be_w1],
              layer2 = blockdiag(pi_w2, be_w2), layer3 = blockdiag(fc_pi_w, fc_beta_w)
    b_ref   : (3, K)    padded biases (layer1, layer2, layer3)
    out_ref : (TB, K)   lane-dense output slab: cols [0, A) = mean, col A = beta
    """
    x = phi_ref[...]

    # Layer 1: one MXU pass covers both branches ([pi_w1 | be_w1]).
    h = jnp.dot(x, w_ref[0], preferred_element_type=jnp.float32) + b_ref[0:1, :]
    h = jnp.maximum(h, 0.0)

    # Layer 2: blockdiag(pi_w2, be_w2); padded rows/cols are zero so branches stay isolated.
    h = jnp.dot(h, w_ref[1], preferred_element_type=jnp.float32) + b_ref[1:2, :]
    h = jnp.maximum(h, 0.0)

    # Layer 3: blockdiag(fc_pi_w, fc_beta_w) -> cols < A: pi pre-activations, col A: beta logit.
    z = jnp.dot(h, w_ref[2], preferred_element_type=jnp.float32) + b_ref[2:3, :]

    # Column-selective nonlinearity: tanh for the mean columns, sigmoid for the beta column.
    col = lax.broadcasted_iota(jnp.int32, z.shape, 1)
    out_ref[...] = jnp.where(col < action_dim, jnp.tanh(z), jax.nn.sigmoid(z))


def single_option_net_forward(phi, params):
    """phi: (B, state_dim) float32. params: dict of weights (see init_params)."""
    B, D = phi.shape
    H = params["pi_w1"].shape[1]
    A = params["fc_pi_w"].shape[1]

    # Uniform lane-dense feature width (multiple of 128) for every buffer.
    K = max(_round_up(D, 128), _round_up(2 * H, 128), _round_up(A + 1, 128))

    # ---- Pack 13 parameter tensors into 2 slabs (plain XLA; in a training loop this
    #      packing would be hoisted out of the step and done once). ----
    w = jnp.zeros((3, K, K), jnp.float32)
    w = w.at[0, :D, :H].set(params["pi_w1"])
    w = w.at[0, :D, H:2 * H].set(params["be_w1"])
    w = w.at[1, :H, :H].set(params["pi_w2"])
    w = w.at[1, H:2 * H, H:2 * H].set(params["be_w2"])
    w = w.at[2, :H, :A].set(params["fc_pi_w"])
    w = w.at[2, H:2 * H, A:A + 1].set(params["fc_beta_w"])

    b = jnp.zeros((3, K), jnp.float32)
    b = b.at[0, :H].set(params["pi_b1"][0])
    b = b.at[0, H:2 * H].set(params["be_b1"][0])
    b = b.at[1, :H].set(params["pi_b2"][0])
    b = b.at[1, H:2 * H].set(params["be_b2"][0])
    b = b.at[2, :A].set(params["fc_pi_b"][0])
    b = b.at[2, A:A + 1].set(params["fc_beta_b"][0])

    # ---- Batch tiling: sublane-aligned, weights stay resident across the grid. ----
    B8 = _round_up(B, 8)
    TB = min(B8, 256)
    B_pad = _round_up(B8, TB)
    phi_pad = jnp.zeros((B_pad, K), jnp.float32).at[:B, :D].set(phi)

    out = pl.pallas_call(
        functools.partial(_fused_kernel, action_dim=A),
        out_shape=jax.ShapeDtypeStruct((B_pad, K), jnp.float32),
        grid=(B_pad // TB,),
        in_specs=[
            pl.BlockSpec((TB, K), lambda i: (i, 0)),        # phi tile walks the batch
            pl.BlockSpec((3, K, K), lambda i: (0, 0, 0)),   # weight slab: resident
            pl.BlockSpec((3, K), lambda i: (0, 0)),         # bias slab: resident
        ],
        out_specs=pl.BlockSpec((TB, K), lambda i: (i, 0)),
        compiler_params=pltpu.CompilerParams(
            dimension_semantics=("parallel",)),             # megacore-shardable batch axis
    )(phi_pad, w, b)

    mean = out[:B, :A]
    beta = out[:B, A:A + 1]
    # std is batch-independent: softplus + broadcast outside the kernel (no store DMA wasted).
    std = jnp.broadcast_to(jax.nn.softplus(params["std"]), (B, A))
    return {"mean": mean, "std": std, "beta": beta}


def init_params(key, state_dim, hidden, action_dim):
    """Deterministic synthetic parameter init (mimics layer_init scaling)."""
    ks = jax.random.split(key, 12)
    n = lambda k, shape, scale=1.0: (scale * jax.random.normal(k, shape, jnp.float32))
    return {
        # pi body (FCBody: two Linear+ReLU layers)
        "pi_w1": n(ks[0], (state_dim, hidden), 0.1),
        "pi_b1": jnp.zeros((1, hidden), jnp.float32),
        "pi_w2": n(ks[1], (hidden, hidden), 0.1),
        "pi_b2": jnp.zeros((1, hidden), jnp.float32),
        # fc_pi (layer_init scale 0.001)
        "fc_pi_w": n(ks[2], (hidden, action_dim), 0.001),
        "fc_pi_b": jnp.zeros((1, action_dim), jnp.float32),
        # beta body
        "be_w1": n(ks[3], (state_dim, hidden), 0.1),
        "be_b1": jnp.zeros((1, hidden), jnp.float32),
        "be_w2": n(ks[4], (hidden, hidden), 0.1),
        "be_b2": jnp.zeros((1, hidden), jnp.float32),
        # fc_beta (layer_init scale 0.001)
        "fc_beta_w": n(ks[5], (hidden, 1), 0.001),
        "fc_beta_b": jnp.zeros((1, 1), jnp.float32),
        # std parameter, torch.zeros((1, action_dim))
        "std": jnp.zeros((1, action_dim), jnp.float32),
    }


def _reference(phi, p):
    relu = lambda x: jnp.maximum(x, 0.0)
    h = relu(relu(phi @ p["pi_w1"] + p["pi_b1"]) @ p["pi_w2"] + p["pi_b2"])
    mean = jnp.tanh(h @ p["fc_pi_w"] + p["fc_pi_b"])
    std = jnp.broadcast_to(jax.nn.softplus(p["std"]), mean.shape)
    g = relu(relu(phi @ p["be_w1"] + p["be_b1"]) @ p["be_w2"] + p["be_b2"])
    beta = jax.nn.sigmoid(g @ p["fc_beta_w"] + p["fc_beta_b"])
    return {"mean": mean, "std": std, "beta": beta}


if __name__ == "__main__":
    key = jax.random.PRNGKey(0)
    k_phi, k_par = jax.random.split(key)

    batch, state_dim, hidden, action_dim = 8, 16, 32, 4
    phi = jax.random.normal(k_phi, (batch, state_dim), jnp.float32)
    params = init_params(k_par, state_dim, hidden, action_dim)

    out = single_option_net_forward(phi, params)
    jax.block_until_ready(out)

    ref = _reference(phi, params)
    for k in ("mean", "std", "beta"):
        assert out[k].shape == ref[k].shape, (k, out[k].shape, ref[k].shape)
        assert jnp.allclose(out[k], ref[k], atol=1e-5, rtol=1e-4), k

    print("KERNEL_OK")
</pallas_src>

<mosaic_0001>
module attributes {stable_mosaic.version = 11 : i64} {
  func.func @_fused_kernel(%arg0: i32, %arg1: memref<8x128xf32, #tpu.memory_space<vmem>>, %arg2: memref<3x128x128xf32, #tpu.memory_space<vmem>>, %arg3: memref<3x128xf32, #tpu.memory_space<vmem>>, %arg4: memref<8x128xf32, #tpu.memory_space<vmem>>) attributes {dimension_semantics = [#tpu.dimension_semantics<parallel>], iteration_bounds = array<i64: 1>, scalar_prefetch = 0 : i64, scratch_operands = 0 : i64, tpu.core_type = #tpu.core_type<tc>, window_params = [{transform_indices = @transform_0, window_bounds = array<i64: 8, 128>}, {pipeline_mode = #tpu.pipeline_mode<synchronous>, transform_indices = @transform_1, window_bounds = array<i64: 3, 128, 128>}, {pipeline_mode = #tpu.pipeline_mode<synchronous>, transform_indices = @transform_2, window_bounds = array<i64: 3, 128>}, {transform_indices = @transform_3, window_bounds = array<i64: 8, 128>}]} {
    %c0 = arith.constant 0 : index
    %c0_0 = arith.constant 0 : index
    %0 = vector.load %arg1[%c0, %c0_0] : memref<8x128xf32, #tpu.memory_space<vmem>>, vector<8x128xf32>
    %c0_1 = arith.constant 0 : index
    %c0_2 = arith.constant 0 : index
    %c0_3 = arith.constant 0 : index
    %1 = vector.load %arg2[%c0_1, %c0_2, %c0_3] : memref<3x128x128xf32, #tpu.memory_space<vmem>>, vector<1x128x128xf32>
    %2 = vector.shape_cast %1 : vector<1x128x128xf32> to vector<128x128xf32>
    %cst = arith.constant dense<0.000000e+00> : vector<8x128xf32>
    %3 = tpu.matmul %0, %2, %cst {dimension_numbers = #tpu.dot_dimension_numbers<[1], [0], [0], [1], [0, 0, 1, 1], [], []>} : vector<8x128xf32>, vector<128x128xf32>, vector<8x128xf32> -> vector<8x128xf32>
    %c0_4 = arith.constant 0 : index
    %c0_5 = arith.constant 0 : index
    %4 = vector.load %arg3[%c0_4, %c0_5] : memref<3x128xf32, #tpu.memory_space<vmem>>, vector<1x128xf32>
    %5 = vector.broadcast %4 : vector<1x128xf32> to vector<8x128xf32>
    %6 = arith.addf %3, %5 : vector<8x128xf32>
    %cst_6 = arith.constant 0.000000e+00 : f32
    %7 = vector.broadcast %cst_6 : f32 to vector<8x128xf32>
    %8 = arith.maximumf %6, %7 : vector<8x128xf32>
    %c1 = arith.constant 1 : index
    %c0_7 = arith.constant 0 : index
    %c0_8 = arith.constant 0 : index
    %9 = vector.load %arg2[%c1, %c0_7, %c0_8] : memref<3x128x128xf32, #tpu.memory_space<vmem>>, vector<1x128x128xf32>
    %10 = vector.shape_cast %9 : vector<1x128x128xf32> to vector<128x128xf32>
    %cst_9 = arith.constant dense<0.000000e+00> : vector<8x128xf32>
    %11 = tpu.matmul %8, %10, %cst_9 {dimension_numbers = #tpu.dot_dimension_numbers<[1], [0], [0], [1], [0, 0, 1, 1], [], []>} : vector<8x128xf32>, vector<128x128xf32>, vector<8x128xf32> -> vector<8x128xf32>
    %c1_10 = arith.constant 1 : index
    %c0_11 = arith.constant 0 : index
    %12 = vector.load %arg3[%c1_10, %c0_11] : memref<3x128xf32, #tpu.memory_space<vmem>>, vector<1x128xf32>
    %13 = vector.broadcast %12 : vector<1x128xf32> to vector<8x128xf32>
    %14 = arith.addf %11, %13 : vector<8x128xf32>
    %cst_12 = arith.constant 0.000000e+00 : f32
    %15 = vector.broadcast %cst_12 : f32 to vector<8x128xf32>
    %16 = arith.maximumf %14, %15 : vector<8x128xf32>
    %c2 = arith.constant 2 : index
    %c0_13 = arith.constant 0 : index
    %c0_14 = arith.constant 0 : index
    %17 = vector.load %arg2[%c2, %c0_13, %c0_14] : memref<3x128x128xf32, #tpu.memory_space<vmem>>, vector<1x128x128xf32>
    %18 = vector.shape_cast %17 : vector<1x128x128xf32> to vector<128x128xf32>
    %cst_15 = arith.constant dense<0.000000e+00> : vector<8x128xf32>
    %19 = tpu.matmul %16, %18, %cst_15 {dimension_numbers = #tpu.dot_dimension_numbers<[1], [0], [0], [1], [0, 0, 1, 1], [], []>} : vector<8x128xf32>, vector<128x128xf32>, vector<8x128xf32> -> vector<8x128xf32>
    %c2_16 = arith.constant 2 : index
    %c0_17 = arith.constant 0 : index
    %20 = vector.load %arg3[%c2_16, %c0_17] : memref<3x128xf32, #tpu.memory_space<vmem>>, vector<1x128xf32>
    %21 = vector.broadcast %20 : vector<1x128xf32> to vector<8x128xf32>
    %22 = arith.addf %19, %21 : vector<8x128xf32>
    %23 = tpu.iota {dimensions = array<i32: 1>} : vector<8x128xi32>
    %c4_i32 = arith.constant 4 : i32
    %24 = vector.broadcast %c4_i32 : i32 to vector<8x128xi32>
    %25 = arith.cmpi slt, %23, %24 : vector<8x128xi32>
    %26 = math.tanh %22 : vector<8x128xf32>
    %27 = arith.negf %22 : vector<8x128xf32>
    %28 = math.exp %27 : vector<8x128xf32>
    %cst_18 = arith.constant 1.000000e+00 : f32
    %29 = vector.broadcast %cst_18 : f32 to vector<8x128xf32>
    %30 = arith.addf %29, %28 : vector<8x128xf32>
    %31 = arith.divf %29, %30 : vector<8x128xf32>
    %32 = arith.select %25, %26, %31 : vector<8x128xi1>, vector<8x128xf32>
    %c0_19 = arith.constant 0 : index
    %c0_20 = arith.constant 0 : index
    %33 = vector.load %arg4[%c0_19, %c0_20] : memref<8x128xf32, #tpu.memory_space<vmem>>, vector<8x128xf32>
    tpu.vector_store %arg4[%c0_19, %c0_20], %32 {strides = array<i32>} : memref<8x128xf32, #tpu.memory_space<vmem>>, vector<8x128xf32>,
    return
  }
  func.func @transform_0(%arg0: i32) -> (i32, i32) {
    %c0_i32 = arith.constant 0 : i32
    %c0_i32_0 = arith.constant 0 : i32
    return %arg0, %c0_i32 : i32, i32
  }
  func.func @transform_1(%arg0: i32) -> (i32, i32, i32) {
    %c0_i32 = arith.constant 0 : i32
    %c0_i32_0 = arith.constant 0 : i32
    %c0_i32_1 = arith.constant 0 : i32
    %c0_i32_2 = arith.constant 0 : i32
    return %c0_i32, %c0_i32_0, %c0_i32_1 : i32, i32, i32
  }
  func.func @transform_2(%arg0: i32) -> (i32, i32) {
    %c0_i32 = arith.constant 0 : i32
    %c0_i32_0 = arith.constant 0 : i32
    %c0_i32_1 = arith.constant 0 : i32
    return %c0_i32, %c0_i32_0 : i32, i32
  }
  func.func @transform_3(%arg0: i32) -> (i32, i32) {
    %c0_i32 = arith.constant 0 : i32
    %c0_i32_0 = arith.constant 0 : i32
    return %arg0, %c0_i32 : i32, i32
  }
}

</mosaic_0001>

<llo_original>
// kernel: tpu_custom_call.1
$region0: #{tpu_custom_call.1}
  #allocation0 [shape = 'u32[]', space=smem, size = 0x4, offset = 0x4, fixed_abs, tag = 'smem constant byte address 0x4 - core index']
  #allocation1 [shape = 'u32[144,128]{1,0:T(1,128)}', space=vmem, size = 0x12000, scoped, tag = 'internal scratch']
  %s0 = inlined_call_operand.hbm [shape: f32[8,128], index: 0, kind: input, shape index: {}]
  %s1 = inlined_call_operand.hbm [shape: f32[3,128,128], index: 1, kind: input, shape index: {}]
  %s2 = inlined_call_operand.vmem [shape: f32[3,128], index: 2, kind: input, shape index: {}]
  %s3 = inlined_call_operand.hbm [shape: f32[8,128], index: 3, kind: output, shape index: {}]
  %s4 = sld [smem:[#allocation0]]
  $region30: #{tpu_custom_call.1} parent=0
    _
  %s6 = ssub.s32 1, %s4
  %s7 = scalar_select 0, %s6, %s4
  $region1: #{tpu_custom_call.1} parent=0
    #allocation2 [shape = 'u8[4096]{0}', space=vmem, size = 0x1000, scoped, tag = 'input window, operand 0, single buffered']
    #allocation3 [shape = 's32[1]{0}', space=sflag, size = 0x4, scoped, tag = 'scoped memory for tpu_custom_call.1']
    #allocation4 [shape = 's32[1]{0}', space=sflag, size = 0x4, scoped, tag = 'scoped memory for tpu_custom_call.1']
    #allocation5 [shape = 'u8[196608]{0}', space=vmem, size = 0x30000, scoped, tag = 'input window, operand 1, single buffered']
    #allocation6 [shape = 's32[1]{0}', space=sflag, size = 0x4, scoped, tag = 'scoped memory for tpu_custom_call.1']
    #allocation7 [shape = 'u8[4096]{0}', space=vmem, size = 0x1000, scoped, tag = 'output window, operand 0, single buffered']
    %8 = vsyncpa [#allocation3], 0
    %9 = vsyncpa [#allocation6], 0
    %10 = vsyncpa [#allocation4], 0
    // Predicated region
    $region2: #{tpu_custom_call.1} parent=1 // pred_check
      _
    $region3: #{tpu_custom_call.1} parent=1 // pred_check_branch
      %12 = sbr.rel (0) target = $region5
    $region4: #{tpu_custom_call.1} parent=1 // pred_region
      %s14 = ssub.s32 128, 128
      %15 = vsyncadd [#allocation3], %s14
      %s17 = sshll.u32 [#allocation2], 4
      %s18 = int_to_ptr.vmem [resolvable:$true] %s17
      %20 = dma.hbm_to_vmem [thread:$0]  %s0, 128, %s18, [#allocation3]
    $region5: #{tpu_custom_call.1} parent=1 // pred_fallthru
      _
    // Predicated region
    $region6: #{tpu_custom_call.1} parent=1 // pred_check
      _
    $region7: #{tpu_custom_call.1} parent=1 // pred_check_branch
      %22 = sbr.rel (0) target = $region9
    $region8: #{tpu_custom_call.1} parent=1 // pred_region
      %s24 = ssub.s32 6144, 6144
      %25 = vsyncadd [#allocation6], %s24
      %s26 = sshll.u32 [#allocation5], 4
      %s27 = int_to_ptr.vmem [resolvable:$true] %s26
      %32 = dma.hbm_to_vmem [thread:$0]  %s1, 6144, %s27, [#allocation6], 128, 128, 8
    $region9: #{tpu_custom_call.1} parent=1 // pred_fallthru
      _
    // Predicated region
    $region10: #{tpu_custom_call.1} parent=1 // pred_check
      _
    $region11: #{tpu_custom_call.1} parent=1 // pred_check_branch
      %34 = sbr.rel (0) target = $region13
    $region12: #{tpu_custom_call.1} parent=1 // pred_region
      _
    $region13: #{tpu_custom_call.1} parent=1 // pred_fallthru
      _
    // Predicated region
    $region14: #{tpu_custom_call.1} parent=1 // pred_check
      _
    $region15: #{tpu_custom_call.1} parent=1 // pred_check_branch
      %36 = sbr.rel (0) target = $region17
    $region16: #{tpu_custom_call.1} parent=1 // pred_region
      %37 = dma.done [#allocation3], 128
    $region17: #{tpu_custom_call.1} parent=1 // pred_fallthru
      _
    // Predicated region
    $region18: #{tpu_custom_call.1} parent=1 // pred_check
      _
    $region19: #{tpu_custom_call.1} parent=1 // pred_check_branch
      %39 = sbr.rel (0) target = $region21
    $region20: #{tpu_custom_call.1} parent=1 // pred_region
      %40 = dma.done [#allocation6], 6144
    $region21: #{tpu_custom_call.1} parent=1 // pred_fallthru
      _
    %v41 = vld [vmem:[#allocation2] sm:$0xff]
    %v42 = vld [vmem:[#allocation5] sm:$0xff]
    %v43 = vld [vmem:[#allocation5 + $0x8] sm:$0xff]
    %v44 = vld [vmem:[#allocation5 + $0x10] sm:$0xff]
    %v45 = vld [vmem:[#allocation5 + $0x18] sm:$0xff]
    %v46 = vld [vmem:[#allocation5 + $0x20] sm:$0xff]
    %v47 = vld [vmem:[#allocation5 + $0x28] sm:$0xff]
    %v48 = vld [vmem:[#allocation5 + $0x30] sm:$0xff]
    %v49 = vld [vmem:[#allocation5 + $0x38] sm:$0xff]
    %v50 = vld [vmem:[#allocation5 + $0x40] sm:$0xff]
    %v51 = vld [vmem:[#allocation5 + $0x48] sm:$0xff]
    %v52 = vld [vmem:[#allocation5 + $0x50] sm:$0xff]
    %v53 = vld [vmem:[#allocation5 + $0x58] sm:$0xff]
    %v54 = vld [vmem:[#allocation5 + $0x60] sm:$0xff]
    %v55 = vld [vmem:[#allocation5 + $0x68] sm:$0xff]
    %v56 = vld [vmem:[#allocation5 + $0x70] sm:$0xff]
    %v57 = vld [vmem:[#allocation5 + $0x78] sm:$0xff]
    %v58 = vld [vmem:[%s2] sm:$0x1]
    %v59 = vlaneseq
    %v60 = vshrl.u32 %v59, 7
    %v61 = vsub.s32 0, %v60
    %v62 = vrot.slane %v58, %v61
    %63 = vmatprep.subr.mxu0 0.0
    %64 = vmatpush1.msra.mxu0 %v42
    %65 = vmatprep.subr.mxu0 0.0
    %66 = vmatpush1.msra.mxu0 %v43
    %67 = vmatprep.subr.mxu0 0.0
    %68 = vmatpush1.msra.mxu0 %v44
    %69 = vmatprep.subr.mxu0 0.0
    %70 = vmatpush1.msra.mxu0 %v45
    %71 = vmatprep.subr.mxu0 0.0
    %72 = vmatpush1.msra.mxu0 %v46
    %73 = vmatprep.subr.mxu0 0.0
    %74 = vmatpush1.msra.mxu0 %v47
    %75 = vmatprep.subr.mxu0 0.0
    %76 = vmatpush1.msra.mxu0 %v48
    %77 = vmatprep.subr.mxu0 0.0
    %78 = vmatpush1.msra.mxu0 %v49
    %79 = vmatprep.subr.mxu0 0.0
    %80 = vmatpush1.msra.mxu0 %v50
    %81 = vmatprep.subr.mxu0 0.0
    %82 = vmatpush1.msra.mxu0 %v51
    %83 = vmatprep.subr.mxu0 0.0
    %84 = vmatpush1.msra.mxu0 %v52
    %85 = vmatprep.subr.mxu0 0.0
    %86 = vmatpush1.msra.mxu0 %v53
    %87 = vmatprep.subr.mxu0 0.0
    %88 = vmatpush1.msra.mxu0 %v54
    %89 = vmatprep.subr.mxu0 0.0
    %90 = vmatpush1.msra.mxu0 %v55
    %91 = vmatprep.subr.mxu0 0.0
    %92 = vmatpush1.msra.mxu0 %v56
    %93 = vmatprep.subr.mxu0 0.0
    %94 = vmatpush1.msra.mxu0 %v57
    %95 = vmatprep.subr.mxu0 0.0
    %96 = vmatpush1.msra.mxu0 0.0
    %97 = vmatprep.subr.mxu0 0.0
    %98 = vmatpush1.msra.mxu0 0.0
    %99 = vmatprep.subr.mxu0 0.0
    %100 = vmatpush1.msra.mxu0 0.0
    %101 = vmatprep.subr.mxu0 0.0
    %102 = vmatpush1.msra.mxu0 0.0
    %103 = vmatprep.subr.mxu0 0.0
    %104 = vmatpush1.msra.mxu0 0.0
    %105 = vmatprep.subr.mxu0 0.0
    %106 = vmatpush1.msra.mxu0 0.0
    %107 = vmatprep.subr.mxu0 0.0
    %108 = vmatpush1.msra.mxu0 0.0
    %109 = vmatprep.subr.mxu0 0.0
    %110 = vmatpush1.msra.mxu0 0.0
    %111 = vmatprep.subr.mxu0 0.0
    %112 = vmatpush1.msra.mxu0 0.0
    %113 = vmatprep.subr.mxu0 0.0
    %114 = vmatpush1.msra.mxu0 0.0
    %115 = vmatprep.subr.mxu0 0.0
    %116 = vmatpush1.msra.mxu0 0.0
    %117 = vmatprep.subr.mxu0 0.0
    %118 = vmatpush1.msra.mxu0 0.0
    %119 = vmatprep.subr.mxu0 0.0
    %120 = vmatpush1.msra.mxu0 0.0
    %121 = vmatprep.subr.mxu0 0.0
    %122 = vmatpush1.msra.mxu0 0.0
    %123 = vmatprep.subr.mxu0 0.0
    %124 = vmatpush1.msra.mxu0 0.0
    %125 = vmatprep.subr.mxu0 0.0
    %126 = vmatpush1.msra.mxu0 0.0
    %127 = vmatprep.mubr.f32.mxu0 0.0
    %128 = vmatmul.mubr.f32.gmra.mrb[0].mxu0 %v41
    %v129 = vpop.f32.mrb[0].mxu0
    %v130 = vadd.f32 %v62, %v129
    %v131 = vpop.f32.mrb[0].mxu0
    %132 = vdwg.mxu0
    %v133 = vmax.f32 %v130, 0.0
    %s134 = scalar_lea.vmem [#allocation5], 128
    %v135 = vld [vmem:[%s134] sm:$0xff]
    %v136 = vld [vmem:[%s134 + $0x8] sm:$0xff]
    %v137 = vld [vmem:[%s134 + $0x10] sm:$0xff]
    %v138 = vld [vmem:[%s134 + $0x18] sm:$0xff]
    %v139 = vld [vmem:[%s134 + $0x20] sm:$0xff]
    %v140 = vld [vmem:[%s134 + $0x28] sm:$0xff]
    %v141 = vld [vmem:[%s134 + $0x30] sm:$0xff]
    %v142 = vld [vmem:[%s134 + $0x38] sm:$0xff]
    %v143 = vld [vmem:[%s134 + $0x40] sm:$0xff]
    %v144 = vld [vmem:[%s134 + $0x48] sm:$0xff]
    %v145 = vld [vmem:[%s134 + $0x50] sm:$0xff]
    %v146 = vld [vmem:[%s134 + $0x58] sm:$0xff]
    %v147 = vld [vmem:[%s134 + $0x60] sm:$0xff]
    %v148 = vld [vmem:[%s134 + $0x68] sm:$0xff]
    %v149 = vld [vmem:[%s134 + $0x70] sm:$0xff]
    %v150 = vld [vmem:[%s134 + $0x78] sm:$0xff]
    %v151 = vld [vmem:[%s2 + $0x1] sm:$0x1]
    %v152 = vlaneseq
    %v153 = vshrl.u32 %v152, 7
    %v154 = vsub.s32 0, %v153
    %v155 = vrot.slane %v151, %v154
    %156 = vmatprep.subr.mxu0 0.0
    %157 = vmatpush1.msra.mxu0 %v135
    %158 = vmatprep.subr.mxu0 0.0
    %159 = vmatpush1.msra.mxu0 %v136
    %160 = vmatprep.subr.mxu0 0.0
    %161 = vmatpush1.msra.mxu0 %v137
    %162 = vmatprep.subr.mxu0 0.0
    %163 = vmatpush1.msra.mxu0 %v138
    %164 = vmatprep.subr.mxu0 0.0
    %165 = vmatpush1.msra.mxu0 %v139
    %166 = vmatprep.subr.mxu0 0.0
    %167 = vmatpush1.msra.mxu0 %v140
    %168 = vmatprep.subr.mxu0 0.0
    %169 = vmatpush1.msra.mxu0 %v141
    %170 = vmatprep.subr.mxu0 0.0
    %171 = vmatpush1.msra.mxu0 %v142
    %172 = vmatprep.subr.mxu0 0.0
    %173 = vmatpush1.msra.mxu0 %v143
    %174 = vmatprep.subr.mxu0 0.0
    %175 = vmatpush1.msra.mxu0 %v144
    %176 = vmatprep.subr.mxu0 0.0
    %177 = vmatpush1.msra.mxu0 %v145
    %178 = vmatprep.subr.mxu0 0.0
    %179 = vmatpush1.msra.mxu0 %v146
    %180 = vmatprep.subr.mxu0 0.0
    %181 = vmatpush1.msra.mxu0 %v147
    %182 = vmatprep.subr.mxu0 0.0
    %183 = vmatpush1.msra.mxu0 %v148
    %184 = vmatprep.subr.mxu0 0.0
    %185 = vmatpush1.msra.mxu0 %v149
    %186 = vmatprep.subr.mxu0 0.0
    %187 = vmatpush1.msra.mxu0 %v150
    %188 = vmatprep.subr.mxu0 0.0
    %189 = vmatpush1.msra.mxu0 0.0
    %190 = vmatprep.subr.mxu0 0.0
    %191 = vmatpush1.msra.mxu0 0.0
    %192 = vmatprep.subr.mxu0 0.0
    %193 = vmatpush1.msra.mxu0 0.0
    %194 = vmatprep.subr.mxu0 0.0
    %195 = vmatpush1.msra.mxu0 0.0
    %196 = vmatprep.subr.mxu0 0.0
    %197 = vmatpush1.msra.mxu0 0.0
    %198 = vmatprep.subr.mxu0 0.0
    %199 = vmatpush1.msra.mxu0 0.0
    %200 = vmatprep.subr.mxu0 0.0
    %201 = vmatpush1.msra.mxu0 0.0
    %202 = vmatprep.subr.mxu0 0.0
    %203 = vmatpush1.msra.mxu0 0.0
    %204 = vmatprep.subr.mxu0 0.0
    %205 = vmatpush1.msra.mxu0 0.0
    %206 = vmatprep.subr.mxu0 0.0
    %207 = vmatpush1.msra.mxu0 0.0
    %208 = vmatprep.subr.mxu0 0.0
    %209 = vmatpush1.msra.mxu0 0.0
    %210 = vmatprep.subr.mxu0 0.0
    %211 = vmatpush1.msra.mxu0 0.0
    %212 = vmatprep.subr.mxu0 0.0
    %213 = vmatpush1.msra.mxu0 0.0
    %214 = vmatprep.subr.mxu0 0.0
    %215 = vmatpush1.msra.mxu0 0.0
    %216 = vmatprep.subr.mxu0 0.0
    %217 = vmatpush1.msra.mxu0 0.0
    %218 = vmatprep.subr.mxu0 0.0
    %219 = vmatpush1.msra.mxu0 0.0
    %220 = vmatprep.mubr.f32.mxu0 0.0
    %221 = vmatmul.mubr.f32.gmra.mrb[0].mxu0 %v133
    %v222 = vpop.f32.mrb[0].mxu0
    %v223 = vadd.f32 %v155, %v222
    %v224 = vpop.f32.mrb[0].mxu0
    %225 = vdwg.mxu0
    %v226 = vmax.f32 %v223, 0.0
    %s227 = scalar_lea.vmem [#allocation5], 256
    %v228 = vld [vmem:[%s227] sm:$0xff]
    %v229 = vld [vmem:[%s227 + $0x8] sm:$0xff]
    %v230 = vld [vmem:[%s227 + $0x10] sm:$0xff]
    %v231 = vld [vmem:[%s227 + $0x18] sm:$0xff]
    %v232 = vld [vmem:[%s227 + $0x20] sm:$0xff]
    %v233 = vld [vmem:[%s227 + $0x28] sm:$0xff]
    %v234 = vld [vmem:[%s227 + $0x30] sm:$0xff]
    %v235 = vld [vmem:[%s227 + $0x38] sm:$0xff]
    %v236 = vld [vmem:[%s227 + $0x40] sm:$0xff]
    %v237 = vld [vmem:[%s227 + $0x48] sm:$0xff]
    %v238 = vld [vmem:[%s227 + $0x50] sm:$0xff]
    %v239 = vld [vmem:[%s227 + $0x58] sm:$0xff]
    %v240 = vld [vmem:[%s227 + $0x60] sm:$0xff]
    %v241 = vld [vmem:[%s227 + $0x68] sm:$0xff]
    %v242 = vld [vmem:[%s227 + $0x70] sm:$0xff]
    %v243 = vld [vmem:[%s227 + $0x78] sm:$0xff]
    %v244 = vld [vmem:[%s2 + $0x2] sm:$0x1]
    %v245 = vlaneseq
    %v246 = vshrl.u32 %v245, 7
    %v247 = vsub.s32 0, %v246
    %v248 = vrot.slane %v244, %v247
    %249 = vmatprep.subr.mxu0 0.0
    %250 = vmatpush1.msra.mxu0 %v228
    %251 = vmatprep.subr.mxu0 0.0
    %252 = vmatpush1.msra.mxu0 %v229
    %253 = vmatprep.subr.mxu0 0.0
    %254 = vmatpush1.msra.mxu0 %v230
    %255 = vmatprep.subr.mxu0 0.0
    %256 = vmatpush1.msra.mxu0 %v231
    %257 = vmatprep.subr.mxu0 0.0
    %258 = vmatpush1.msra.mxu0 %v232
    %259 = vmatprep.subr.mxu0 0.0
    %260 = vmatpush1.msra.mxu0 %v233
    %261 = vmatprep.subr.mxu0 0.0
    %262 = vmatpush1.msra.mxu0 %v234
    %263 = vmatprep.subr.mxu0 0.0
    %264 = vmatpush1.msra.mxu0 %v235
    %265 = vmatprep.subr.mxu0 0.0
    %266 = vmatpush1.msra.mxu0 %v236
    %267 = vmatprep.subr.mxu0 0.0
    %268 = vmatpush1.msra.mxu0 %v237
    %269 = vmatprep.subr.mxu0 0.0
    %270 = vmatpush1.msra.mxu0 %v238
    %271 = vmatprep.subr.mxu0 0.0
    %272 = vmatpush1.msra.mxu0 %v239
    %273 = vmatprep.subr.mxu0 0.0
    %274 = vmatpush1.msra.mxu0 %v240
    %275 = vmatprep.subr.mxu0 0.0
    %276 = vmatpush1.msra.mxu0 %v241
    %277 = vmatprep.subr.mxu0 0.0
    %278 = vmatpush1.msra.mxu0 %v242
    %279 = vmatprep.subr.mxu0 0.0
    %280 = vmatpush1.msra.mxu0 %v243
    %281 = vmatprep.subr.mxu0 0.0
    %282 = vmatpush1.msra.mxu0 0.0
    %283 = vmatprep.subr.mxu0 0.0
    %284 = vmatpush1.msra.mxu0 0.0
    %285 = vmatprep.subr.mxu0 0.0
    %286 = vmatpush1.msra.mxu0 0.0
    %287 = vmatprep.subr.mxu0 0.0
    %288 = vmatpush1.msra.mxu0 0.0
    %289 = vmatprep.subr.mxu0 0.0
    %290 = vmatpush1.msra.mxu0 0.0
    %291 = vmatprep.subr.mxu0 0.0
    %292 = vmatpush1.msra.mxu0 0.0
    %293 = vmatprep.subr.mxu0 0.0
    %294 = vmatpush1.msra.mxu0 0.0
    %295 = vmatprep.subr.mxu0 0.0
    %296 = vmatpush1.msra.mxu0 0.0
    %297 = vmatprep.subr.mxu0 0.0
    %298 = vmatpush1.msra.mxu0 0.0
    %299 = vmatprep.subr.mxu0 0.0
    %300 = vmatpush1.msra.mxu0 0.0
    %301 = vmatprep.subr.mxu0 0.0
    %302 = vmatpush1.msra.mxu0 0.0
    %303 = vmatprep.subr.mxu0 0.0
    %304 = vmatpush1.msra.mxu0 0.0
    %305 = vmatprep.subr.mxu0 0.0
    %306 = vmatpush1.msra.mxu0 0.0
    %307 = vmatprep.subr.mxu0 0.0
    %308 = vmatpush1.msra.mxu0 0.0
    %309 = vmatprep.subr.mxu0 0.0
    %310 = vmatpush1.msra.mxu0 0.0
    %311 = vmatprep.subr.mxu0 0.0
    %312 = vmatpush1.msra.mxu0 0.0
    %313 = vmatprep.mubr.f32.mxu0 0.0
    %314 = vmatmul.mubr.f32.gmra.mrb[0].mxu0 %v226
    %v315 = vpop.f32.mrb[0].mxu0
    %v316 = vadd.f32 %v248, %v315
    %v317 = vpop.f32.mrb[0].mxu0
    %318 = vdwg.mxu0
    %v319 = vlaneseq
    %v320 = vand.u32 %v319, 127
    %vm321 = vcmp.lt.s32.totalorder %v320, 4
    %v322 = vtanh.pop %v316
    %v323 = vxor.u32 %v316, 2147483648
    %v324 = vmul.f32 %v323, 1.442695
    %v325 = vpow.pop %v324
    %v326 = vadd.f32 %v325, 1.0
    %v327 = vrcp.pop %v326
    %v328 = vmul.f32 1.0, %v327
    %v329 = vsel %vm321, %v322, %v328
    %330 = vst [vmem:[#allocation7] sm:$0xff] %v329
    // Predicated region
    $region22: #{tpu_custom_call.1} parent=1 // pred_check
      _
    $region23: #{tpu_custom_call.1} parent=1 // pred_check_branch
      %332 = sbr.rel (0) target = $region25
    $region24: #{tpu_custom_call.1} parent=1 // pred_region
      %s334 = ssub.s32 128, 128
      %335 = vsyncadd [#allocation4], %s334
      %s337 = sshll.u32 [#allocation7], 4
      %s338 = int_to_ptr.vmem [resolvable:$true] %s337
      %340 = dma.vmem_to_hbm [thread:$0]  %s338, 128, %s3, [#allocation4]
    $region25: #{tpu_custom_call.1} parent=1 // pred_fallthru
      _
    // Predicated region
    $region26: #{tpu_custom_call.1} parent=1 // pred_check
      _
    $region27: #{tpu_custom_call.1} parent=1 // pred_check_branch
      %342 = sbr.rel (0) target = $region29
    $region28: #{tpu_custom_call.1} parent=1 // pred_region
      %343 = dma.done [#allocation4], 128
    $region29: #{tpu_custom_call.1} parent=1 // pred_fallthru
      _
    %344 = vsyncpa [#allocation3], 1
    %345 = vsyncpa [#allocation6], 1
    %346 = vsyncpa [#allocation4], 1

</llo_original>
